<compile_context>
chip_gen: v5e
topology: v5e:2x2
jax: 0.10.0
libtpu: 0.0.40
codegen_flags: <defaults>
</compile_context>

<pallas_src>
import functools
import math

import jax
import jax.numpy as jnp
from jax import lax
from jax.experimental import pallas as pl
from jax.experimental.pallas import tpu as pltpu


def _round_up(v, m):
    return ((v + m - 1) // m) * m


def _morlet_conv_kernel(f_ref, x_ref, o_ref, *, C, K, L_out, L_stride):
    # f_ref : SMEM (C, K)            precomputed Morlet filter bank
    # x_ref : VMEM (TN, L)           raw waveform rows for this batch tile
    # o_ref : VMEM (TN, C*L_stride)  flattened (class, position) output slab
    TN, L = x_ref.shape
    zcol = jnp.zeros((TN, 1), jnp.float32)

    # ---- k = 0 (tap that touches the LEFT padding=1 column) ------------------
    # window[l] = 0 if l == 0 else x[l-1]
    if L_out > 1:
        w = jnp.concatenate([zcol, x_ref[:, 0:L_out - 1]], axis=1)
    else:
        w = zcol
    accs = [w * f_ref[c, 0] for c in range(C)]

    # ---- interior taps k = 1 .. K-2 : fully in-range windows of x ------------
    # k outer / c inner: each shifted window is materialized once and reused by
    # all C accumulators (scalar * vector FMAs off the SMEM filter bank).
    for k in range(1, K - 1):
        w = x_ref[:, k - 1:k - 1 + L_out]
        for c in range(C):
            accs[c] = accs[c] + w * f_ref[c, k]

    # ---- k = K-1 (tap that touches the RIGHT padding=1 column) ---------------
    # window[l] = x[l + K - 2] for l <= L_out-2, 0 at l = L_out-1
    if L_out > 1:
        w = jnp.concatenate([x_ref[:, K - 2:K - 2 + L_out - 1], zcol], axis=1)
    else:
        w = zcol
    for c in range(C):
        accs[c] = accs[c] + w * f_ref[c, K - 1]
        # Per-class segments start at lane-aligned offsets when L_stride is the
        # 128-padded stride; row-major layout still matches (N, C, L_out).
        o_ref[:, c * L_stride:c * L_stride + L_out] = accs[c]


def _pick_batch_tile(N, per_row_bytes, budget_bytes):
    """Batch-tile size: as large as the VMEM budget allows (capped at 512 rows),
    multiple of 8, and sized so the grid has >= 2 steps whenever N permits
    (keeps both v7x TensorCores busy and the DMA pipeline primed)."""
    n8 = _round_up(max(int(N), 1), 8)
    by_budget = (budget_bytes // max(per_row_bytes, 1)) // 8 * 8
    tn_cap = max(8, min(512, by_budget, n8))
    steps = pl.cdiv(n8, tn_cap)
    if steps == 1 and n8 >= 16:
        steps = 2
    tn = _round_up(pl.cdiv(n8, steps), 8)
    return int(min(tn, tn_cap))


def morlet_fast_forward(waveforms, a_, b_, kernel_size):
    """JAX/Pallas port of Morlet_fast.forward (stride=1, padding=1, no bias).

    waveforms: (N, 1, L) float32 (PyTorch NCL layout)
    a_, b_:    (num_classs,) parameters (as in the module's __init__)
    """
    # Replicate the __init__ kernel-size adjustment (effective K is always even).
    K = kernel_size - 1
    if kernel_size % 2 == 0:
        K += 1
    if K < 2:
        raise ValueError("kernel_size too small for Morlet_fast")
    C = int(a_.shape[0])
    half = K // 2

    N, Cin, L = waveforms.shape
    if Cin != 1:
        raise ValueError("Morlet_fast only supports one input channel")
    L_out = L + 2 - K + 1          # padding=1, stride=1
    if L_out <= 0:
        raise ValueError(f"effective kernel size {K} too large for length {L}")

    # (C, K) Morlet filter bank, exactly as the PyTorch forward computes it:
    #   p = t - b_/a_ ; Morlet(p) = pi^0.25 * exp(-p^2/2) * cos(2*pi*p)
    t_right = jnp.linspace(0.0, K / 2 - 1, half, dtype=jnp.float32)
    t_left = jnp.linspace(-(K / 2) + 1, -1.0, half, dtype=jnp.float32)
    t = jnp.concatenate([t_left, t_right])                                  # (K,)
    ba = (b_.astype(jnp.float32) / a_.astype(jnp.float32)).reshape(C, 1)
    p = t[None, :] - ba                                                     # (C, K)
    filt = (math.pi ** 0.25) * jnp.exp(-0.5 * p * p) * jnp.cos(2.0 * math.pi * p)

    x = waveforms[:, 0, :].astype(jnp.float32)                              # (N, L)

    # Lane-aligned per-class output stride, only when the padding overhead is
    # small (<= 12.5% extra writeback); otherwise keep the exact L_out stride
    # so the final reshape stays free and no extra HBM pass is added.
    L_pad = _round_up(L_out, 128)
    L_stride = L_pad if L_pad * 8 <= L_out * 9 else L_out

    # Chip-aware VMEM budget (v5e/v6e: 128 MiB physical, v7x: 64 MiB per TC).
    try:
        phys_vmem = int(pltpu.get_tpu_info().vmem_capacity_bytes)
    except Exception:
        phys_vmem = 64 * 1024 * 1024              # conservative (v7x-sized) fallback
    vmem_limit = min(phys_vmem // 2, 64 * 1024 * 1024)

    # Per-row VMEM: double-buffered input + output blocks, plus the C
    # accumulators and ~2 window temporaries the compiler keeps live.
    per_row = 4 * (2 * L + 2 * C * L_stride + C * L_out + 2 * L_out)
    budget = (vmem_limit * 7) // 10
    if 8 * per_row > budget:
        # Long-signal fallback: grow the scoped limit rather than fail outright.
        # TODO(synk): add an L_out tiling grid axis (with a K-1 input halo) for
        # signals whose per-row working set exceeds even the raised limit.
        vmem_limit = min((phys_vmem * 9) // 10,
                         max(vmem_limit, (8 * per_row * 10) // 7 + (1 << 20)))
        budget = (vmem_limit * 7) // 10

    TN = _pick_batch_tile(N, per_row, budget)
    N_pad = pl.cdiv(N, TN) * TN
    if N_pad != N:
        x = jnp.pad(x, ((0, N_pad - N), (0, 0)))    # keeps every block in-bounds
    grid = (N_pad // TN,)

    kernel = functools.partial(_morlet_conv_kernel,
                               C=C, K=K, L_out=L_out, L_stride=L_stride)

    out2d = pl.pallas_call(
        kernel,
        out_shape=jax.ShapeDtypeStruct((N_pad, C * L_stride), jnp.float32),
        grid=grid,
        in_specs=[
            pl.BlockSpec(memory_space=pltpu.MemorySpace.SMEM),   # (C, K) filter bank
            pl.BlockSpec((TN, L), lambda i: (i, 0)),             # batch tile
        ],
        out_specs=pl.BlockSpec((TN, C * L_stride), lambda i: (i, 0)),
        compiler_params=pltpu.CompilerParams(
            dimension_semantics=("parallel",),
            vmem_limit_bytes=int(vmem_limit),
        ),
    )(filt, x)

    # Row-major (N_pad, C*L_stride) == (N_pad, C, L_stride): reshape is free.
    out = out2d.reshape(N_pad, C, L_stride)
    if (N_pad != N) or (L_stride != L_out):
        out = out[:N, :, :L_out]
    return out


if __name__ == "__main__":
    num_classs = 4
    kernel_size = 8           # -> effective Morlet kernel length K = 8
    N, L = 2, 16

    # Parameters exactly as in the module's __init__.
    a_ = jnp.linspace(1.0, 10.0, num_classs, dtype=jnp.float32)
    b_ = jnp.linspace(0.0, 10.0, num_classs, dtype=jnp.float32)

    key = jax.random.PRNGKey(0)
    waveforms = jax.random.normal(key, (N, 1, L), dtype=jnp.float32)

    out = jax.block_until_ready(morlet_fast_forward(waveforms, a_, b_, kernel_size))

    # Pure-JAX reference (XLA conv) for a correctness sanity check.
    K = kernel_size - 1
    if kernel_size % 2 == 0:
        K += 1
    half = K // 2
    t_right = jnp.linspace(0.0, K / 2 - 1, half, dtype=jnp.float32)
    t_left = jnp.linspace(-(K / 2) + 1, -1.0, half, dtype=jnp.float32)
    p = jnp.concatenate([t_left, t_right])[None, :] - (b_ / a_)[:, None]
    filt = (math.pi ** 0.25) * jnp.exp(-0.5 * p * p) * jnp.cos(2.0 * math.pi * p)
    ref = lax.conv_general_dilated(
        waveforms, filt[:, None, :], window_strides=(1,), padding=[(1, 1)],
        dimension_numbers=("NCH", "OIH", "NCH"))

    assert out.shape == ref.shape, (out.shape, ref.shape)
    assert jnp.allclose(out, ref, atol=1e-4, rtol=1e-4), float(jnp.max(jnp.abs(out - ref)))
    print("KERNEL_OK")
</pallas_src>

<mosaic_0001>
module attributes {stable_mosaic.version = 11 : i64} {
  func.func @_morlet_conv_kernel(%arg0: i32, %arg1: memref<4x8xf32, #tpu.memory_space<smem>>, %arg2: memref<8x16xf32, #tpu.memory_space<vmem>>, %arg3: memref<8x44xf32, #tpu.memory_space<vmem>>) attributes {dimension_semantics = [#tpu.dimension_semantics<parallel>], iteration_bounds = array<i64: 1>, scalar_prefetch = 0 : i64, scratch_operands = 0 : i64, tpu.core_type = #tpu.core_type<tc>, window_params = [{transform_indices = @transform_0, window_bounds = array<i64: 4, 8>}, {transform_indices = @transform_1, window_bounds = array<i64: 8, 16>}, {transform_indices = @transform_2, window_bounds = array<i64: 8, 44>}]} {
    %cst = arith.constant 0.000000e+00 : f32
    %0 = vector.broadcast %cst : f32 to vector<8x1xf32>
    %c0 = arith.constant 0 : index
    %c0_0 = arith.constant 0 : index
    %1 = vector.load %arg2[%c0, %c0_0] : memref<8x16xf32, #tpu.memory_space<vmem>>, vector<8x10xf32>
    %2 = tpu.concatenate %0, %1 in 1 : vector<8x1xf32>, vector<8x10xf32> -> vector<8x11xf32>
    %c0_1 = arith.constant 0 : index
    %c0_2 = arith.constant 0 : index
    %3 = memref.load %arg1[%c0_1, %c0_2] : memref<4x8xf32, #tpu.memory_space<smem>>
    %4 = vector.broadcast %3 : f32 to vector<8x11xf32>
    %5 = arith.mulf %2, %4 : vector<8x11xf32>
    %c1 = arith.constant 1 : index
    %c0_3 = arith.constant 0 : index
    %6 = memref.load %arg1[%c1, %c0_3] : memref<4x8xf32, #tpu.memory_space<smem>>
    %7 = vector.broadcast %6 : f32 to vector<8x11xf32>
    %8 = arith.mulf %2, %7 : vector<8x11xf32>
    %c2 = arith.constant 2 : index
    %c0_4 = arith.constant 0 : index
    %9 = memref.load %arg1[%c2, %c0_4] : memref<4x8xf32, #tpu.memory_space<smem>>
    %10 = vector.broadcast %9 : f32 to vector<8x11xf32>
    %11 = arith.mulf %2, %10 : vector<8x11xf32>
    %c3 = arith.constant 3 : index
    %c0_5 = arith.constant 0 : index
    %12 = memref.load %arg1[%c3, %c0_5] : memref<4x8xf32, #tpu.memory_space<smem>>
    %13 = vector.broadcast %12 : f32 to vector<8x11xf32>
    %14 = arith.mulf %2, %13 : vector<8x11xf32>
    %c0_6 = arith.constant 0 : index
    %c0_7 = arith.constant 0 : index
    %15 = vector.load %arg2[%c0_6, %c0_7] : memref<8x16xf32, #tpu.memory_space<vmem>>, vector<8x11xf32>
    %c0_8 = arith.constant 0 : index
    %c1_9 = arith.constant 1 : index
    %16 = memref.load %arg1[%c0_8, %c1_9] : memref<4x8xf32, #tpu.memory_space<smem>>
    %17 = vector.broadcast %16 : f32 to vector<8x11xf32>
    %18 = arith.mulf %15, %17 : vector<8x11xf32>
    %19 = arith.addf %5, %18 : vector<8x11xf32>
    %c1_10 = arith.constant 1 : index
    %c1_11 = arith.constant 1 : index
    %20 = memref.load %arg1[%c1_10, %c1_11] : memref<4x8xf32, #tpu.memory_space<smem>>
    %21 = vector.broadcast %20 : f32 to vector<8x11xf32>
    %22 = arith.mulf %15, %21 : vector<8x11xf32>
    %23 = arith.addf %8, %22 : vector<8x11xf32>
    %c2_12 = arith.constant 2 : index
    %c1_13 = arith.constant 1 : index
    %24 = memref.load %arg1[%c2_12, %c1_13] : memref<4x8xf32, #tpu.memory_space<smem>>
    %25 = vector.broadcast %24 : f32 to vector<8x11xf32>
    %26 = arith.mulf %15, %25 : vector<8x11xf32>
    %27 = arith.addf %11, %26 : vector<8x11xf32>
    %c3_14 = arith.constant 3 : index
    %c1_15 = arith.constant 1 : index
    %28 = memref.load %arg1[%c3_14, %c1_15] : memref<4x8xf32, #tpu.memory_space<smem>>
    %29 = vector.broadcast %28 : f32 to vector<8x11xf32>
    %30 = arith.mulf %15, %29 : vector<8x11xf32>
    %31 = arith.addf %14, %30 : vector<8x11xf32>
    %c0_16 = arith.constant 0 : index
    %c1_17 = arith.constant 1 : index
    %32 = vector.load %arg2[%c0_16, %c1_17] : memref<8x16xf32, #tpu.memory_space<vmem>>, vector<8x11xf32>
    %c0_18 = arith.constant 0 : index
    %c2_19 = arith.constant 2 : index
    %33 = memref.load %arg1[%c0_18, %c2_19] : memref<4x8xf32, #tpu.memory_space<smem>>
    %34 = vector.broadcast %33 : f32 to vector<8x11xf32>
    %35 = arith.mulf %32, %34 : vector<8x11xf32>
    %36 = arith.addf %19, %35 : vector<8x11xf32>
    %c1_20 = arith.constant 1 : index
    %c2_21 = arith.constant 2 : index
    %37 = memref.load %arg1[%c1_20, %c2_21] : memref<4x8xf32, #tpu.memory_space<smem>>
    %38 = vector.broadcast %37 : f32 to vector<8x11xf32>
    %39 = arith.mulf %32, %38 : vector<8x11xf32>
    %40 = arith.addf %23, %39 : vector<8x11xf32>
    %c2_22 = arith.constant 2 : index
    %c2_23 = arith.constant 2 : index
    %41 = memref.load %arg1[%c2_22, %c2_23] : memref<4x8xf32, #tpu.memory_space<smem>>
    %42 = vector.broadcast %41 : f32 to vector<8x11xf32>
    %43 = arith.mulf %32, %42 : vector<8x11xf32>
    %44 = arith.addf %27, %43 : vector<8x11xf32>
    %c3_24 = arith.constant 3 : index
    %c2_25 = arith.constant 2 : index
    %45 = memref.load %arg1[%c3_24, %c2_25] : memref<4x8xf32, #tpu.memory_space<smem>>
    %46 = vector.broadcast %45 : f32 to vector<8x11xf32>
    %47 = arith.mulf %32, %46 : vector<8x11xf32>
    %48 = arith.addf %31, %47 : vector<8x11xf32>
    %c0_26 = arith.constant 0 : index
    %c2_27 = arith.constant 2 : index
    %49 = vector.load %arg2[%c0_26, %c2_27] : memref<8x16xf32, #tpu.memory_space<vmem>>, vector<8x11xf32>
    %c0_28 = arith.constant 0 : index
    %c3_29 = arith.constant 3 : index
    %50 = memref.load %arg1[%c0_28, %c3_29] : memref<4x8xf32, #tpu.memory_space<smem>>
    %51 = vector.broadcast %50 : f32 to vector<8x11xf32>
    %52 = arith.mulf %49, %51 : vector<8x11xf32>
    %53 = arith.addf %36, %52 : vector<8x11xf32>
    %c1_30 = arith.constant 1 : index
    %c3_31 = arith.constant 3 : index
    %54 = memref.load %arg1[%c1_30, %c3_31] : memref<4x8xf32, #tpu.memory_space<smem>>
    %55 = vector.broadcast %54 : f32 to vector<8x11xf32>
    %56 = arith.mulf %49, %55 : vector<8x11xf32>
    %57 = arith.addf %40, %56 : vector<8x11xf32>
    %c2_32 = arith.constant 2 : index
    %c3_33 = arith.constant 3 : index
    %58 = memref.load %arg1[%c2_32, %c3_33] : memref<4x8xf32, #tpu.memory_space<smem>>
    %59 = vector.broadcast %58 : f32 to vector<8x11xf32>
    %60 = arith.mulf %49, %59 : vector<8x11xf32>
    %61 = arith.addf %44, %60 : vector<8x11xf32>
    %c3_34 = arith.constant 3 : index
    %c3_35 = arith.constant 3 : index
    %62 = memref.load %arg1[%c3_34, %c3_35] : memref<4x8xf32, #tpu.memory_space<smem>>
    %63 = vector.broadcast %62 : f32 to vector<8x11xf32>
    %64 = arith.mulf %49, %63 : vector<8x11xf32>
    %65 = arith.addf %48, %64 : vector<8x11xf32>
    %c0_36 = arith.constant 0 : index
    %c3_37 = arith.constant 3 : index
    %66 = vector.load %arg2[%c0_36, %c3_37] : memref<8x16xf32, #tpu.memory_space<vmem>>, vector<8x11xf32>
    %c0_38 = arith.constant 0 : index
    %c4 = arith.constant 4 : index
    %67 = memref.load %arg1[%c0_38, %c4] : memref<4x8xf32, #tpu.memory_space<smem>>
    %68 = vector.broadcast %67 : f32 to vector<8x11xf32>
    %69 = arith.mulf %66, %68 : vector<8x11xf32>
    %70 = arith.addf %53, %69 : vector<8x11xf32>
    %c1_39 = arith.constant 1 : index
    %c4_40 = arith.constant 4 : index
    %71 = memref.load %arg1[%c1_39, %c4_40] : memref<4x8xf32, #tpu.memory_space<smem>>
    %72 = vector.broadcast %71 : f32 to vector<8x11xf32>
    %73 = arith.mulf %66, %72 : vector<8x11xf32>
    %74 = arith.addf %57, %73 : vector<8x11xf32>
    %c2_41 = arith.constant 2 : index
    %c4_42 = arith.constant 4 : index
    %75 = memref.load %arg1[%c2_41, %c4_42] : memref<4x8xf32, #tpu.memory_space<smem>>
    %76 = vector.broadcast %75 : f32 to vector<8x11xf32>
    %77 = arith.mulf %66, %76 : vector<8x11xf32>
    %78 = arith.addf %61, %77 : vector<8x11xf32>
    %c3_43 = arith.constant 3 : index
    %c4_44 = arith.constant 4 : index
    %79 = memref.load %arg1[%c3_43, %c4_44] : memref<4x8xf32, #tpu.memory_space<smem>>
    %80 = vector.broadcast %79 : f32 to vector<8x11xf32>
    %81 = arith.mulf %66, %80 : vector<8x11xf32>
    %82 = arith.addf %65, %81 : vector<8x11xf32>
    %c0_45 = arith.constant 0 : index
    %c4_46 = arith.constant 4 : index
    %83 = vector.load %arg2[%c0_45, %c4_46] : memref<8x16xf32, #tpu.memory_space<vmem>>, vector<8x11xf32>
    %c0_47 = arith.constant 0 : index
    %c5 = arith.constant 5 : index
    %84 = memref.load %arg1[%c0_47, %c5] : memref<4x8xf32, #tpu.memory_space<smem>>
    %85 = vector.broadcast %84 : f32 to vector<8x11xf32>
    %86 = arith.mulf %83, %85 : vector<8x11xf32>
    %87 = arith.addf %70, %86 : vector<8x11xf32>
    %c1_48 = arith.constant 1 : index
    %c5_49 = arith.constant 5 : index
    %88 = memref.load %arg1[%c1_48, %c5_49] : memref<4x8xf32, #tpu.memory_space<smem>>
    %89 = vector.broadcast %88 : f32 to vector<8x11xf32>
    %90 = arith.mulf %83, %89 : vector<8x11xf32>
    %91 = arith.addf %74, %90 : vector<8x11xf32>
    %c2_50 = arith.constant 2 : index
    %c5_51 = arith.constant 5 : index
    %92 = memref.load %arg1[%c2_50, %c5_51] : memref<4x8xf32, #tpu.memory_space<smem>>
    %93 = vector.broadcast %92 : f32 to vector<8x11xf32>
    %94 = arith.mulf %83, %93 : vector<8x11xf32>
    %95 = arith.addf %78, %94 : vector<8x11xf32>
    %c3_52 = arith.constant 3 : index
    %c5_53 = arith.constant 5 : index
    %96 = memref.load %arg1[%c3_52, %c5_53] : memref<4x8xf32, #tpu.memory_space<smem>>
    %97 = vector.broadcast %96 : f32 to vector<8x11xf32>
    %98 = arith.mulf %83, %97 : vector<8x11xf32>
    %99 = arith.addf %82, %98 : vector<8x11xf32>
    %c0_54 = arith.constant 0 : index
    %c5_55 = arith.constant 5 : index
    %100 = vector.load %arg2[%c0_54, %c5_55] : memref<8x16xf32, #tpu.memory_space<vmem>>, vector<8x11xf32>
    %c0_56 = arith.constant 0 : index
    %c6 = arith.constant 6 : index
    %101 = memref.load %arg1[%c0_56, %c6] : memref<4x8xf32, #tpu.memory_space<smem>>
    %102 = vector.broadcast %101 : f32 to vector<8x11xf32>
    %103 = arith.mulf %100, %102 : vector<8x11xf32>
    %104 = arith.addf %87, %103 : vector<8x11xf32>
    %c1_57 = arith.constant 1 : index
    %c6_58 = arith.constant 6 : index
    %105 = memref.load %arg1[%c1_57, %c6_58] : memref<4x8xf32, #tpu.memory_space<smem>>
    %106 = vector.broadcast %105 : f32 to vector<8x11xf32>
    %107 = arith.mulf %100, %106 : vector<8x11xf32>
    %108 = arith.addf %91, %107 : vector<8x11xf32>
    %c2_59 = arith.constant 2 : index
    %c6_60 = arith.constant 6 : index
    %109 = memref.load %arg1[%c2_59, %c6_60] : memref<4x8xf32, #tpu.memory_space<smem>>
    %110 = vector.broadcast %109 : f32 to vector<8x11xf32>
    %111 = arith.mulf %100, %110 : vector<8x11xf32>
    %112 = arith.addf %95, %111 : vector<8x11xf32>
    %c3_61 = arith.constant 3 : index
    %c6_62 = arith.constant 6 : index
    %113 = memref.load %arg1[%c3_61, %c6_62] : memref<4x8xf32, #tpu.memory_space<smem>>
    %114 = vector.broadcast %113 : f32 to vector<8x11xf32>
    %115 = arith.mulf %100, %114 : vector<8x11xf32>
    %116 = arith.addf %99, %115 : vector<8x11xf32>
    %c0_63 = arith.constant 0 : index
    %c6_64 = arith.constant 6 : index
    %117 = vector.load %arg2[%c0_63, %c6_64] : memref<8x16xf32, #tpu.memory_space<vmem>>, vector<8x10xf32>
    %118 = tpu.concatenate %117, %0 in 1 : vector<8x10xf32>, vector<8x1xf32> -> vector<8x11xf32>
    %c0_65 = arith.constant 0 : index
    %c7 = arith.constant 7 : index
    %119 = memref.load %arg1[%c0_65, %c7] : memref<4x8xf32, #tpu.memory_space<smem>>
    %120 = vector.broadcast %119 : f32 to vector<8x11xf32>
    %121 = arith.mulf %118, %120 : vector<8x11xf32>
    %122 = arith.addf %104, %121 : vector<8x11xf32>
    %c0_66 = arith.constant 0 : index
    %c0_67 = arith.constant 0 : index
    %123 = vector.load %arg3[%c0_66, %c0_67] : memref<8x44xf32, #tpu.memory_space<vmem>>, vector<8x11xf32>
    tpu.vector_store %arg3[%c0_66, %c0_67], %122 {strides = array<i32>} : memref<8x44xf32, #tpu.memory_space<vmem>>, vector<8x11xf32>,
    %c1_68 = arith.constant 1 : index
    %c7_69 = arith.constant 7 : index
    %124 = memref.load %arg1[%c1_68, %c7_69] : memref<4x8xf32, #tpu.memory_space<smem>>
    %125 = vector.broadcast %124 : f32 to vector<8x11xf32>
    %126 = arith.mulf %118, %125 : vector<8x11xf32>
    %127 = arith.addf %108, %126 : vector<8x11xf32>
    %c0_70 = arith.constant 0 : index
    %c11 = arith.constant 11 : index
    %128 = vector.load %arg3[%c0_70, %c11] : memref<8x44xf32, #tpu.memory_space<vmem>>, vector<8x11xf32>
    tpu.vector_store %arg3[%c0_70, %c11], %127 {strides = array<i32>} : memref<8x44xf32, #tpu.memory_space<vmem>>, vector<8x11xf32>,
    %c2_71 = arith.constant 2 : index
    %c7_72 = arith.constant 7 : index
    %129 = memref.load %arg1[%c2_71, %c7_72] : memref<4x8xf32, #tpu.memory_space<smem>>
    %130 = vector.broadcast %129 : f32 to vector<8x11xf32>
    %131 = arith.mulf %118, %130 : vector<8x11xf32>
    %132 = arith.addf %112, %131 : vector<8x11xf32>
    %c0_73 = arith.constant 0 : index
    %c22 = arith.constant 22 : index
    %133 = vector.load %arg3[%c0_73, %c22] : memref<8x44xf32, #tpu.memory_space<vmem>>, vector<8x11xf32>
    tpu.vector_store %arg3[%c0_73, %c22], %132 {strides = array<i32>} : memref<8x44xf32, #tpu.memory_space<vmem>>, vector<8x11xf32>,
    %c3_74 = arith.constant 3 : index
    %c7_75 = arith.constant 7 : index
    %134 = memref.load %arg1[%c3_74, %c7_75] : memref<4x8xf32, #tpu.memory_space<smem>>
    %135 = vector.broadcast %134 : f32 to vector<8x11xf32>
    %136 = arith.mulf %118, %135 : vector<8x11xf32>
    %137 = arith.addf %116, %136 : vector<8x11xf32>
    %c0_76 = arith.constant 0 : index
    %c33 = arith.constant 33 : index
    %138 = vector.load %arg3[%c0_76, %c33] : memref<8x44xf32, #tpu.memory_space<vmem>>, vector<8x11xf32>
    tpu.vector_store %arg3[%c0_76, %c33], %137 {strides = array<i32>} : memref<8x44xf32, #tpu.memory_space<vmem>>, vector<8x11xf32>,
    return
  }
  func.func @transform_0(%arg0: i32) -> (i32, i32) {
    %c0_i32 = arith.constant 0 : i32
    %c0_i32_0 = arith.constant 0 : i32
    %c0_i32_1 = arith.constant 0 : i32
    return %c0_i32, %c0_i32_0 : i32, i32
  }
  func.func @transform_1(%arg0: i32) -> (i32, i32) {
    %c0_i32 = arith.constant 0 : i32
    %c0_i32_0 = arith.constant 0 : i32
    return %arg0, %c0_i32 : i32, i32
  }
  func.func @transform_2(%arg0: i32) -> (i32, i32) {
    %c0_i32 = arith.constant 0 : i32
    %c0_i32_0 = arith.constant 0 : i32
    return %arg0, %c0_i32 : i32, i32
  }
}

</mosaic_0001>

<llo_original>
// kernel: tpu_custom_call.1
$region0: #{tpu_custom_call.1}
  #allocation0 [shape = 'u32[]', space=smem, size = 0x4, offset = 0x4, fixed_abs, tag = 'smem constant byte address 0x4 - core index']
  #allocation1 [shape = 'u32[72,128]{1,0:T(1,128)}', space=vmem, size = 0x9000, scoped, tag = 'internal scratch']
  %s0 = inlined_call_operand.hbm [shape: f32[4,8], index: 0, kind: input, shape index: {}]
  %s1 = inlined_call_operand.hbm [shape: f32[8,16], index: 1, kind: input, shape index: {}]
  %s2 = inlined_call_operand.hbm [shape: f32[8,44], index: 2, kind: output, shape index: {}]
  %s3 = sld [smem:[#allocation0]]
  $region26: #{tpu_custom_call.1} parent=0
    _
  %s5 = ssub.s32 1, %s3
  %s6 = scalar_select 0, %s5, %s3
  $region1: #{tpu_custom_call.1} parent=0
    #allocation2 [shape = 'u8[2048]{0}', space=smem, size = 0x800, scoped, tag = 'input window, operand 0, single buffered']
    #allocation3 [shape = 's32[1]{0}', space=sflag, size = 0x4, scoped, tag = 'scoped memory for tpu_custom_call.1']
    #allocation4 [shape = 's32[1]{0}', space=sflag, size = 0x4, scoped, tag = 'scoped memory for tpu_custom_call.1']
    #allocation5 [shape = 's32[1]{0}', space=sflag, size = 0x4, scoped, tag = 'scoped memory for tpu_custom_call.1']
    #allocation6 [shape = 'u8[4096]{0}', space=vmem, size = 0x1000, scoped, tag = 'input window, operand 1, single buffered']
    #allocation7 [shape = 'u8[4096]{0}', space=vmem, size = 0x1000, scoped, tag = 'output window, operand 0, single buffered']
    %7 = vsyncpa [#allocation5], 0
    %8 = vsyncpa [#allocation3], 0
    %9 = vsyncpa [#allocation4], 0
    // Predicated region
    $region2: #{tpu_custom_call.1} parent=1 // pred_check
      _
    $region3: #{tpu_custom_call.1} parent=1 // pred_check_branch
      %11 = sbr.rel (0) target = $region5
    $region4: #{tpu_custom_call.1} parent=1 // pred_region
      %13 = vsyncadd [#allocation5], 0
      %s15 = sshll.u32 %s0, 4
      %s16 = int_to_ptr.hbm [resolvable:$true] %s15
      %18 = dma.hbm_to_smem %s16, 64, [#allocation2], [#allocation5]
    $region5: #{tpu_custom_call.1} parent=1 // pred_fallthru
      _
    // Predicated region
    $region6: #{tpu_custom_call.1} parent=1 // pred_check
      _
    $region7: #{tpu_custom_call.1} parent=1 // pred_check_branch
      %20 = sbr.rel (0) target = $region9
    $region8: #{tpu_custom_call.1} parent=1 // pred_region
      %22 = vsyncadd [#allocation3], 0
      %s24 = sshll.u32 %s1, 4
      %s25 = int_to_ptr.hbm [resolvable:$true] %s24
      %s26 = sshll.u32 [#allocation6], 4
      %s27 = int_to_ptr.vmem [resolvable:$true] %s26
      %29 = dma.hbm_to_vmem [thread:$0]  %s25, 128, %s27, [#allocation3]
    $region9: #{tpu_custom_call.1} parent=1 // pred_fallthru
      _
    // Predicated region
    $region10: #{tpu_custom_call.1} parent=1 // pred_check
      _
    $region11: #{tpu_custom_call.1} parent=1 // pred_check_branch
      %31 = sbr.rel (0) target = $region13
    $region12: #{tpu_custom_call.1} parent=1 // pred_region
      %33 = dma.done [#allocation5], 64
    $region13: #{tpu_custom_call.1} parent=1 // pred_fallthru
      _
    // Predicated region
    $region14: #{tpu_custom_call.1} parent=1 // pred_check
      _
    $region15: #{tpu_custom_call.1} parent=1 // pred_check_branch
      %35 = sbr.rel (0) target = $region17
    $region16: #{tpu_custom_call.1} parent=1 // pred_region
      %37 = dma.done [#allocation3], 128
    $region17: #{tpu_custom_call.1} parent=1 // pred_fallthru
      _
    %38 = sfence
    %v39 = vld [vmem:[#allocation6] sm:$0xff]
    %41 = vrot.lane.b32.xlu0 %v39, 1
    %v42 = vpop.permute.xlu0 %41
    %vm44 = vcmask 7168
    %v45 = vsel %vm44, 0.0, %v42
    %s46 = sld [smem:[#allocation2]]
    %v47 = vstv %s46
    %v48 = vmul.f32 %v45, %v47
    %s49 = sld [smem:[#allocation2 + $0x80]]
    %v50 = vstv %s49
    %v51 = vmul.f32 %v45, %v50
    %s52 = sld [smem:[#allocation2 + $0x100]]
    %v53 = vstv %s52
    %v54 = vmul.f32 %v45, %v53
    %s55 = sld [smem:[#allocation2 + $0x180]]
    %v56 = vstv %s55
    %v57 = vmul.f32 %v45, %v56
    %s58 = sld [smem:[#allocation2 + $0x1]]
    %v59 = vstv %s58
    %v60 = vmul.f32 %v39, %v59
    %v61 = vadd.f32 %v48, %v60
    %s62 = sld [smem:[#allocation2 + $0x81]]
    %v63 = vstv %s62
    %v64 = vmul.f32 %v39, %v63
    %v65 = vadd.f32 %v51, %v64
    %s66 = sld [smem:[#allocation2 + $0x101]]
    %v67 = vstv %s66
    %v68 = vmul.f32 %v39, %v67
    %v69 = vadd.f32 %v54, %v68
    %s70 = sld [smem:[#allocation2 + $0x181]]
    %v71 = vstv %s70
    %v72 = vmul.f32 %v39, %v71
    %v73 = vadd.f32 %v57, %v72
    %s74 = sld [smem:[#allocation2 + $0x2]]
    %v75 = vstv %s74
    %v76 = vmul.f32 %v39, %v75
    %78 = vrot.lane.b32.xlu0 %v76, 127
    %v79 = vpop.permute.xlu0 %78
    %v81 = vadd.f32 %v61, %v79
    %s82 = sld [smem:[#allocation2 + $0x82]]
    %v83 = vstv %s82
    %v84 = vmul.f32 %v39, %v83
    %86 = vrot.lane.b32.xlu0 %v84, 127
    %v87 = vpop.permute.xlu0 %86
    %v89 = vadd.f32 %v65, %v87
    %s90 = sld [smem:[#allocation2 + $0x102]]
    %v91 = vstv %s90
    %v92 = vmul.f32 %v39, %v91
    %94 = vrot.lane.b32.xlu0 %v92, 127
    %v95 = vpop.permute.xlu0 %94
    %v97 = vadd.f32 %v69, %v95
    %s98 = sld [smem:[#allocation2 + $0x182]]
    %v99 = vstv %s98
    %v100 = vmul.f32 %v39, %v99
    %102 = vrot.lane.b32.xlu0 %v100, 127
    %v103 = vpop.permute.xlu0 %102
    %v105 = vadd.f32 %v73, %v103
    %s106 = sld [smem:[#allocation2 + $0x3]]
    %v107 = vstv %s106
    %v108 = vmul.f32 %v39, %v107
    %110 = vrot.lane.b32.xlu0 %v108, 126
    %v111 = vpop.permute.xlu0 %110
    %v113 = vadd.f32 %v81, %v111
    %s114 = sld [smem:[#allocation2 + $0x83]]
    %v115 = vstv %s114
    %v116 = vmul.f32 %v39, %v115
    %118 = vrot.lane.b32.xlu0 %v116, 126
    %v119 = vpop.permute.xlu0 %118
    %v121 = vadd.f32 %v89, %v119
    %s122 = sld [smem:[#allocation2 + $0x103]]
    %v123 = vstv %s122
    %v124 = vmul.f32 %v39, %v123
    %126 = vrot.lane.b32.xlu0 %v124, 126
    %v127 = vpop.permute.xlu0 %126
    %v129 = vadd.f32 %v97, %v127
    %s130 = sld [smem:[#allocation2 + $0x183]]
    %v131 = vstv %s130
    %v132 = vmul.f32 %v39, %v131
    %134 = vrot.lane.b32.xlu0 %v132, 126
    %v135 = vpop.permute.xlu0 %134
    %v137 = vadd.f32 %v105, %v135
    %s138 = sld [smem:[#allocation2 + $0x4]]
    %v139 = vstv %s138
    %v140 = vmul.f32 %v39, %v139
    %142 = vrot.lane.b32.xlu0 %v140, 125
    %v143 = vpop.permute.xlu0 %142
    %v145 = vadd.f32 %v113, %v143
    %s146 = sld [smem:[#allocation2 + $0x84]]
    %v147 = vstv %s146
    %v148 = vmul.f32 %v39, %v147
    %150 = vrot.lane.b32.xlu0 %v148, 125
    %v151 = vpop.permute.xlu0 %150
    %v153 = vadd.f32 %v121, %v151
    %s154 = sld [smem:[#allocation2 + $0x104]]
    %v155 = vstv %s154
    %v156 = vmul.f32 %v39, %v155
    %158 = vrot.lane.b32.xlu0 %v156, 125
    %v159 = vpop.permute.xlu0 %158
    %v161 = vadd.f32 %v129, %v159
    %s162 = sld [smem:[#allocation2 + $0x184]]
    %v163 = vstv %s162
    %v164 = vmul.f32 %v39, %v163
    %166 = vrot.lane.b32.xlu0 %v164, 125
    %v167 = vpop.permute.xlu0 %166
    %v169 = vadd.f32 %v137, %v167
    %s170 = sld [smem:[#allocation2 + $0x5]]
    %v171 = vstv %s170
    %v172 = vmul.f32 %v39, %v171
    %174 = vrot.lane.b32.xlu0 %v172, 124
    %v175 = vpop.permute.xlu0 %174
    %v177 = vadd.f32 %v145, %v175
    %s178 = sld [smem:[#allocation2 + $0x85]]
    %v179 = vstv %s178
    %v180 = vmul.f32 %v39, %v179
    %182 = vrot.lane.b32.xlu0 %v180, 124
    %v183 = vpop.permute.xlu0 %182
    %v185 = vadd.f32 %v153, %v183
    %s186 = sld [smem:[#allocation2 + $0x105]]
    %v187 = vstv %s186
    %v188 = vmul.f32 %v39, %v187
    %190 = vrot.lane.b32.xlu0 %v188, 124
    %v191 = vpop.permute.xlu0 %190
    %v193 = vadd.f32 %v161, %v191
    %s194 = sld [smem:[#allocation2 + $0x185]]
    %v195 = vstv %s194
    %v196 = vmul.f32 %v39, %v195
    %198 = vrot.lane.b32.xlu0 %v196, 124
    %v199 = vpop.permute.xlu0 %198
    %v201 = vadd.f32 %v169, %v199
    %s202 = sld [smem:[#allocation2 + $0x6]]
    %v203 = vstv %s202
    %v204 = vmul.f32 %v39, %v203
    %206 = vrot.lane.b32.xlu0 %v204, 123
    %v207 = vpop.permute.xlu0 %206
    %v209 = vadd.f32 %v177, %v207
    %s210 = sld [smem:[#allocation2 + $0x86]]
    %v211 = vstv %s210
    %v212 = vmul.f32 %v39, %v211
    %214 = vrot.lane.b32.xlu0 %v212, 123
    %v215 = vpop.permute.xlu0 %214
    %v217 = vadd.f32 %v185, %v215
    %s218 = sld [smem:[#allocation2 + $0x106]]
    %v219 = vstv %s218
    %v220 = vmul.f32 %v39, %v219
    %222 = vrot.lane.b32.xlu0 %v220, 123
    %v223 = vpop.permute.xlu0 %222
    %v225 = vadd.f32 %v193, %v223
    %s226 = sld [smem:[#allocation2 + $0x186]]
    %v227 = vstv %s226
    %v228 = vmul.f32 %v39, %v227
    %230 = vrot.lane.b32.xlu0 %v228, 123
    %v231 = vpop.permute.xlu0 %230
    %v233 = vadd.f32 %v201, %v231
    %234 = vrot.lane.b32.xlu0 %v39, 122
    %v235 = vpop.permute.xlu0 %234
    %vm237 = vcmask 80896
    %v238 = vsel %vm237, %v235, 0.0
    %s239 = sld [smem:[#allocation2 + $0x7]]
    %v240 = vstv %s239
    %v241 = vmul.f32 %v238, %v240
    %v242 = vadd.f32 %v209, %v241
    %vm243 = vcmask 89088
    %244 = vst.msk [vmem:[#allocation7] sm:$0xff] %vm243, %v242
    %s245 = sld [smem:[#allocation2 + $0x87]]
    %v246 = vstv %s245
    %v247 = vmul.f32 %v238, %v246
    %v248 = vadd.f32 %v217, %v247
    %250 = vrot.lane.b32.xlu0 %v248, 11
    %v251 = vpop.permute.xlu0 %250
    %vm253 = vcmask 179288
    %254 = vst.msk [vmem:[#allocation7] sm:$0xff] %vm253, %v251
    %s255 = sld [smem:[#allocation2 + $0x107]]
    %v256 = vstv %s255
    %v257 = vmul.f32 %v238, %v256
    %v258 = vadd.f32 %v225, %v257
    %260 = vrot.lane.b32.xlu0 %v258, 22
    %v261 = vpop.permute.xlu0 %260
    %vm263 = vcmask 269488
    %264 = vst.msk [vmem:[#allocation7] sm:$0xff] %vm263, %v261
    %s265 = sld [smem:[#allocation2 + $0x187]]
    %v266 = vstv %s265
    %v267 = vmul.f32 %v238, %v266
    %v268 = vadd.f32 %v233, %v267
    %270 = vrot.lane.b32.xlu0 %v268, 33
    %v271 = vpop.permute.xlu0 %270
    %vm273 = vcmask 359688
    %274 = vst.msk [vmem:[#allocation7] sm:$0xff] %vm273, %v271
    // Predicated region
    $region18: #{tpu_custom_call.1} parent=1 // pred_check
      _
    $region19: #{tpu_custom_call.1} parent=1 // pred_check_branch
      %276 = sbr.rel (0) target = $region21
    $region20: #{tpu_custom_call.1} parent=1 // pred_region
      %278 = vsyncadd [#allocation4], 0
      %s280 = sshll.u32 [#allocation7], 4
      %s281 = int_to_ptr.vmem [resolvable:$true] %s280
      %s282 = sshll.u32 %s2, 4
      %s283 = int_to_ptr.hbm [resolvable:$true] %s282
      %285 = dma.vmem_to_hbm [thread:$0]  %s281, 128, %s283, [#allocation4]
    $region21: #{tpu_custom_call.1} parent=1 // pred_fallthru
      _
    // Predicated region
    $region22: #{tpu_custom_call.1} parent=1 // pred_check
      _
    $region23: #{tpu_custom_call.1} parent=1 // pred_check_branch
      %287 = sbr.rel (0) target = $region25
    $region24: #{tpu_custom_call.1} parent=1 // pred_region
      %289 = dma.done [#allocation4], 128
    $region25: #{tpu_custom_call.1} parent=1 // pred_fallthru
      _
    %290 = vsyncpa [#allocation3], 1
    %291 = vsyncpa [#allocation4], 1
    %292 = vsyncpa [#allocation5], 1

</llo_original>
